<compile_context>
chip_gen: v7x
topology: tpu7x:2x2x1
jax: 0.10.0
libtpu: 0.0.40
codegen_flags: <defaults>
</compile_context>

<pallas_src>
import functools

import jax
import jax.numpy as jnp
from jax.experimental import pallas as pl
from jax.experimental.pallas import tpu as pltpu

P_DROP = 0.2
D_IN, H1, H2, D_OUT = 784, 128, 64, 10
D_IN_PAD = 896  # 7 * 128 (lane-aligned input width)

_KEEP_THRESHOLD = int(P_DROP * (2 ** 32))   # drop iff bits < threshold  => P(keep)=0.8
_INV_KEEP = 1.0 / (1.0 - P_DROP)


def _random_bits(shape, row_base_u32, seed_u32, salt):
    """Counter-based hash PRNG (splitmix32-style finalizer).

    Pure uint32 VPU ops, so it lowers both on real TPUs and in interpret mode
    (no pltpu.prng_* primitives). Each (global_row, col, seed, layer_salt)
    tuple maps to an independent 32-bit value.
    """
    rows = jax.lax.broadcasted_iota(jnp.uint32, shape, 0) + row_base_u32
    cols = jax.lax.broadcasted_iota(jnp.uint32, shape, 1)
    x = (rows * jnp.uint32(0x9E3779B9)) ^ (cols * jnp.uint32(0x85EBCA6B))
    x = x ^ seed_u32 ^ jnp.uint32(salt)
    x = (x ^ (x >> 16)) * jnp.uint32(0x7FEB352D)
    x = (x ^ (x >> 15)) * jnp.uint32(0x846CA68B)
    return x ^ (x >> 16)


def _dropout(h, row_base_u32, seed_u32, salt):
    """Inverted dropout (matches F.dropout(p=0.2, training=True) semantics)."""
    bits = _random_bits(h.shape, row_base_u32, seed_u32, salt)
    keep = bits >= jnp.uint32(_KEEP_THRESHOLD)          # integer threshold compare
    return jnp.where(keep, h * _INV_KEep if False else h * _INV_KEEP, 0.0)


def mlp_kernel(seed_ref,                                  # scalar-prefetch (SMEM)
               x_ref, w1_ref, b1_ref, w2_ref, b2_ref, w3_ref, b3_ref,
               o_ref, *, tb):
    seed = seed_ref[0].astype(jnp.uint32)
    row_base = (pl.program_id(0) * tb).astype(jnp.uint32)  # global row offset of tile

    x = x_ref[...]

    h = jnp.dot(x, w1_ref[...], preferred_element_type=jnp.float32) + b1_ref[...]
    h = jnp.maximum(h, 0.0)
    h = _dropout(h, row_base, seed, 0x1234ABCD)

    h = jnp.dot(h, w2_ref[...], preferred_element_type=jnp.float32) + b2_ref[...]
    h = jnp.maximum(h, 0.0)
    h = _dropout(h, row_base, seed, 0x5678EF01)

    logits = jnp.dot(h, w3_ref[...], preferred_element_type=jnp.float32) + b3_ref[...]

    # log_softmax over dim=1 (features)
    m = jnp.max(logits, axis=1, keepdims=True)
    z = logits - m
    lse = jnp.log(jnp.sum(jnp.exp(z), axis=1, keepdims=True))
    o_ref[...] = (z - lse).astype(o_ref.dtype)


def mlp_forward(x, params, *, seed=0, tb=512):
    """x: [B, 784] float32. params: (w1[784,128], b1[1,128], w2[128,64], b2[1,64],
    w3[64,10], b3[1,10]). Returns log-probabilities [B, 10]."""
    w1, b1, w2, b2, w3, b3 = params
    B = x.shape[0]

    # Effective batch tile: cap at B, round up to a sublane multiple of 8.
    tb_eff = min(tb, B)
    tb_eff = ((tb_eff + 7) // 8) * 8
    b_pad = ((B + tb_eff - 1) // tb_eff) * tb_eff

    # Zero-pad: batch rows -> multiple of tb_eff; features 784 -> 896 (7*128).
    # Zero x-columns paired with zero W1-rows keep the result numerically identical.
    x_p = jnp.pad(x, ((0, b_pad - B), (0, D_IN_PAD - D_IN)))
    w1_p = jnp.pad(w1, ((0, D_IN_PAD - D_IN), (0, 0)))

    seed_arr = jnp.array([seed], dtype=jnp.int32)
    kernel = functools.partial(mlp_kernel, tb=tb_eff)

    out = pl.pallas_call(
        kernel,
        out_shape=jax.ShapeDtypeStruct((b_pad, D_OUT), jnp.float32),
        grid_spec=pltpu.PrefetchScalarGridSpec(
            num_scalar_prefetch=1,
            grid=(b_pad // tb_eff,),
            in_specs=[
                pl.BlockSpec((tb_eff, D_IN_PAD), lambda i, seed: (i, 0)),
                pl.BlockSpec((D_IN_PAD, H1),     lambda i, seed: (0, 0)),
                pl.BlockSpec((1, H1),            lambda i, seed: (0, 0)),
                pl.BlockSpec((H1, H2),           lambda i, seed: (0, 0)),
                pl.BlockSpec((1, H2),            lambda i, seed: (0, 0)),
                pl.BlockSpec((H2, D_OUT),        lambda i, seed: (0, 0)),
                pl.BlockSpec((1, D_OUT),         lambda i, seed: (0, 0)),
            ],
            out_specs=pl.BlockSpec((tb_eff, D_OUT), lambda i, seed: (i, 0)),
        ),
        compiler_params=pltpu.CompilerParams(
            dimension_semantics=("parallel",)),   # batch tiles independent -> megacore-safe
    )(seed_arr, x_p, w1_p, b1, w2, b2, w3, b3)

    return out[:B]


def init_params(key):
    k1, k2, k3 = jax.random.split(key, 3)
    # Deterministic synthetic init (scaled normal); shapes match nn.Linear (transposed).
    w1 = jax.random.normal(k1, (D_IN, H1), jnp.float32) * (1.0 / jnp.sqrt(D_IN))
    b1 = jnp.zeros((1, H1), jnp.float32)
    w2 = jax.random.normal(k2, (H1, H2), jnp.float32) * (1.0 / jnp.sqrt(H1))
    b2 = jnp.zeros((1, H2), jnp.float32)
    w3 = jax.random.normal(k3, (H2, D_OUT), jnp.float32) * (1.0 / jnp.sqrt(H2))
    b3 = jnp.zeros((1, D_OUT), jnp.float32)
    return (w1, b1, w2, b2, w3, b3)


if __name__ == "__main__":
    key = jax.random.PRNGKey(0)
    kx, kp = jax.random.split(key)

    B = 16
    x = jax.random.normal(kx, (B, D_IN), jnp.float32)
    params = init_params(kp)

    # Small tile here so the multi-step grid path is exercised; production calls
    # use the default tb=512.
    out = mlp_forward(x, params, seed=0, tb=8)
    out = jax.block_until_ready(out)

    assert out.shape == (B, D_OUT)
    # log_softmax rows should (approximately) sum to 1 after exp
    row_sums = jnp.exp(out).sum(axis=1)
    assert jnp.allclose(row_sums, 1.0, atol=1e-4), row_sums
    assert bool(jnp.all(jnp.isfinite(out)))

    print("KERNEL_OK")
</pallas_src>

<mosaic_0001>
module attributes {stable_mosaic.version = 11 : i64} {
  func.func @mlp_kernel(%arg0: i32, %arg1: memref<1xi32, #tpu.memory_space<smem>>, %arg2: memref<8x896xf32, #tpu.memory_space<vmem>>, %arg3: memref<896x128xf32, #tpu.memory_space<vmem>>, %arg4: memref<1x128xf32, #tpu.memory_space<vmem>>, %arg5: memref<128x64xf32, #tpu.memory_space<vmem>>, %arg6: memref<1x64xf32, #tpu.memory_space<vmem>>, %arg7: memref<64x10xf32, #tpu.memory_space<vmem>>, %arg8: memref<1x10xf32, #tpu.memory_space<vmem>>, %arg9: memref<8x10xf32, #tpu.memory_space<vmem>>) attributes {dimension_semantics = [#tpu.dimension_semantics<parallel>], iteration_bounds = array<i64: 2>, scalar_prefetch = 1 : i64, scratch_operands = 0 : i64, tpu.core_type = #tpu.core_type<tc>, window_params = [{transform_indices = @transform_0, window_bounds = array<i64: 8, 896>}, {pipeline_mode = #tpu.pipeline_mode<synchronous>, transform_indices = @transform_1, window_bounds = array<i64: 896, 128>}, {pipeline_mode = #tpu.pipeline_mode<synchronous>, transform_indices = @transform_2, window_bounds = array<i64: 1, 128>}, {pipeline_mode = #tpu.pipeline_mode<synchronous>, transform_indices = @transform_3, window_bounds = array<i64: 128, 64>}, {pipeline_mode = #tpu.pipeline_mode<synchronous>, transform_indices = @transform_4, window_bounds = array<i64: 1, 64>}, {pipeline_mode = #tpu.pipeline_mode<synchronous>, transform_indices = @transform_5, window_bounds = array<i64: 64, 10>}, {pipeline_mode = #tpu.pipeline_mode<synchronous>, transform_indices = @transform_6, window_bounds = array<i64: 1, 10>}, {transform_indices = @transform_7, window_bounds = array<i64: 8, 10>}]} {
    %c0 = arith.constant 0 : index
    %0 = memref.load %arg1[%c0] : memref<1xi32, #tpu.memory_space<smem>>
    %c8_i32 = arith.constant 8 : i32
    %1 = arith.muli %arg0, %c8_i32 : i32
    %c0_0 = arith.constant 0 : index
    %c0_1 = arith.constant 0 : index
    %2 = vector.load %arg2[%c0_0, %c0_1] : memref<8x896xf32, #tpu.memory_space<vmem>>, vector<8x896xf32>
    %c0_2 = arith.constant 0 : index
    %c0_3 = arith.constant 0 : index
    %3 = vector.load %arg3[%c0_2, %c0_3] : memref<896x128xf32, #tpu.memory_space<vmem>>, vector<896x128xf32>
    %cst = arith.constant dense<0.000000e+00> : vector<8x128xf32>
    %4 = tpu.matmul %2, %3, %cst {dimension_numbers = #tpu.dot_dimension_numbers<[1], [0], [0], [1], [0, 0, 1, 1], [], []>} : vector<8x896xf32>, vector<896x128xf32>, vector<8x128xf32> -> vector<8x128xf32>
    %c0_4 = arith.constant 0 : index
    %c0_5 = arith.constant 0 : index
    %5 = vector.load %arg4[%c0_4, %c0_5] : memref<1x128xf32, #tpu.memory_space<vmem>>, vector<1x128xf32>
    %6 = vector.broadcast %5 : vector<1x128xf32> to vector<8x128xf32>
    %7 = arith.addf %4, %6 : vector<8x128xf32>
    %cst_6 = arith.constant 0.000000e+00 : f32
    %8 = vector.broadcast %cst_6 : f32 to vector<8x128xf32>
    %9 = arith.maximumf %7, %8 : vector<8x128xf32>
    %10 = tpu.iota {dimensions = array<i32: 0>} : vector<8x128xi32>
    %11 = vector.broadcast %1 : i32 to vector<8x128xi32>
    %12 = arith.addi %10, %11 : vector<8x128xi32>
    %13 = tpu.iota {dimensions = array<i32: 1>} : vector<8x128xi32>
    %c-1640531527_i32 = arith.constant -1640531527 : i32
    %14 = vector.broadcast %c-1640531527_i32 : i32 to vector<8x128xi32>
    %15 = arith.muli %12, %14 : vector<8x128xi32>
    %c-2048144789_i32 = arith.constant -2048144789 : i32
    %16 = vector.broadcast %c-2048144789_i32 : i32 to vector<8x128xi32>
    %17 = arith.muli %13, %16 : vector<8x128xi32>
    %18 = arith.xori %15, %17 : vector<8x128xi32>
    %19 = vector.broadcast %0 : i32 to vector<8x128xi32>
    %20 = arith.xori %18, %19 : vector<8x128xi32>
    %c305441741_i32 = arith.constant 305441741 : i32
    %21 = vector.broadcast %c305441741_i32 : i32 to vector<8x128xi32>
    %22 = arith.xori %20, %21 : vector<8x128xi32>
    %c16_i32 = arith.constant 16 : i32
    %23 = vector.broadcast %c16_i32 : i32 to vector<8x128xi32>
    %24 = arith.shrui %22, %23 : vector<8x128xi32>
    %25 = arith.xori %22, %24 : vector<8x128xi32>
    %c2146121005_i32 = arith.constant 2146121005 : i32
    %26 = vector.broadcast %c2146121005_i32 : i32 to vector<8x128xi32>
    %27 = arith.muli %25, %26 : vector<8x128xi32>
    %c15_i32 = arith.constant 15 : i32
    %28 = vector.broadcast %c15_i32 : i32 to vector<8x128xi32>
    %29 = arith.shrui %27, %28 : vector<8x128xi32>
    %30 = arith.xori %27, %29 : vector<8x128xi32>
    %c-2073254261_i32 = arith.constant -2073254261 : i32
    %31 = vector.broadcast %c-2073254261_i32 : i32 to vector<8x128xi32>
    %32 = arith.muli %30, %31 : vector<8x128xi32>
    %c16_i32_7 = arith.constant 16 : i32
    %33 = vector.broadcast %c16_i32_7 : i32 to vector<8x128xi32>
    %34 = arith.shrui %32, %33 : vector<8x128xi32>
    %35 = arith.xori %32, %34 : vector<8x128xi32>
    %c858993459_i32 = arith.constant 858993459 : i32
    %36 = vector.broadcast %c858993459_i32 : i32 to vector<8x128xi32>
    %37 = arith.cmpi uge, %35, %36 : vector<8x128xi32>
    %cst_8 = arith.constant 1.250000e+00 : f32
    %38 = vector.broadcast %cst_8 : f32 to vector<8x128xf32>
    %39 = arith.mulf %9, %38 : vector<8x128xf32>
    %cst_9 = arith.constant 0.000000e+00 : f32
    %40 = vector.broadcast %cst_9 : f32 to vector<8x128xf32>
    %41 = arith.select %37, %39, %40 : vector<8x128xi1>, vector<8x128xf32>
    %c0_10 = arith.constant 0 : index
    %c0_11 = arith.constant 0 : index
    %42 = vector.load %arg5[%c0_10, %c0_11] : memref<128x64xf32, #tpu.memory_space<vmem>>, vector<128x64xf32>
    %cst_12 = arith.constant dense<0.000000e+00> : vector<8x64xf32>
    %43 = tpu.matmul %41, %42, %cst_12 {dimension_numbers = #tpu.dot_dimension_numbers<[1], [0], [0], [1], [0, 0, 1, 1], [], []>} : vector<8x128xf32>, vector<128x64xf32>, vector<8x64xf32> -> vector<8x64xf32>
    %c0_13 = arith.constant 0 : index
    %c0_14 = arith.constant 0 : index
    %44 = vector.load %arg6[%c0_13, %c0_14] : memref<1x64xf32, #tpu.memory_space<vmem>>, vector<1x64xf32>
    %45 = vector.broadcast %44 : vector<1x64xf32> to vector<8x64xf32>
    %46 = arith.addf %43, %45 : vector<8x64xf32>
    %cst_15 = arith.constant 0.000000e+00 : f32
    %47 = vector.broadcast %cst_15 : f32 to vector<8x64xf32>
    %48 = arith.maximumf %46, %47 : vector<8x64xf32>
    %49 = tpu.iota {dimensions = array<i32: 0>} : vector<8x64xi32>
    %50 = vector.broadcast %1 : i32 to vector<8x64xi32>
    %51 = arith.addi %49, %50 : vector<8x64xi32>
    %52 = tpu.iota {dimensions = array<i32: 1>} : vector<8x64xi32>
    %c-1640531527_i32_16 = arith.constant -1640531527 : i32
    %53 = vector.broadcast %c-1640531527_i32_16 : i32 to vector<8x64xi32>
    %54 = arith.muli %51, %53 : vector<8x64xi32>
    %c-2048144789_i32_17 = arith.constant -2048144789 : i32
    %55 = vector.broadcast %c-2048144789_i32_17 : i32 to vector<8x64xi32>
    %56 = arith.muli %52, %55 : vector<8x64xi32>
    %57 = arith.xori %54, %56 : vector<8x64xi32>
    %58 = vector.broadcast %0 : i32 to vector<8x64xi32>
    %59 = arith.xori %57, %58 : vector<8x64xi32>
    %c1450766081_i32 = arith.constant 1450766081 : i32
    %60 = vector.broadcast %c1450766081_i32 : i32 to vector<8x64xi32>
    %61 = arith.xori %59, %60 : vector<8x64xi32>
    %c16_i32_18 = arith.constant 16 : i32
    %62 = vector.broadcast %c16_i32_18 : i32 to vector<8x64xi32>
    %63 = arith.shrui %61, %62 : vector<8x64xi32>
    %64 = arith.xori %61, %63 : vector<8x64xi32>
    %c2146121005_i32_19 = arith.constant 2146121005 : i32
    %65 = vector.broadcast %c2146121005_i32_19 : i32 to vector<8x64xi32>
    %66 = arith.muli %64, %65 : vector<8x64xi32>
    %c15_i32_20 = arith.constant 15 : i32
    %67 = vector.broadcast %c15_i32_20 : i32 to vector<8x64xi32>
    %68 = arith.shrui %66, %67 : vector<8x64xi32>
    %69 = arith.xori %66, %68 : vector<8x64xi32>
    %c-2073254261_i32_21 = arith.constant -2073254261 : i32
    %70 = vector.broadcast %c-2073254261_i32_21 : i32 to vector<8x64xi32>
    %71 = arith.muli %69, %70 : vector<8x64xi32>
    %c16_i32_22 = arith.constant 16 : i32
    %72 = vector.broadcast %c16_i32_22 : i32 to vector<8x64xi32>
    %73 = arith.shrui %71, %72 : vector<8x64xi32>
    %74 = arith.xori %71, %73 : vector<8x64xi32>
    %c858993459_i32_23 = arith.constant 858993459 : i32
    %75 = vector.broadcast %c858993459_i32_23 : i32 to vector<8x64xi32>
    %76 = arith.cmpi uge, %74, %75 : vector<8x64xi32>
    %cst_24 = arith.constant 1.250000e+00 : f32
    %77 = vector.broadcast %cst_24 : f32 to vector<8x64xf32>
    %78 = arith.mulf %48, %77 : vector<8x64xf32>
    %cst_25 = arith.constant 0.000000e+00 : f32
    %79 = vector.broadcast %cst_25 : f32 to vector<8x64xf32>
    %80 = arith.select %76, %78, %79 : vector<8x64xi1>, vector<8x64xf32>
    %c0_26 = arith.constant 0 : index
    %c0_27 = arith.constant 0 : index
    %81 = vector.load %arg7[%c0_26, %c0_27] : memref<64x10xf32, #tpu.memory_space<vmem>>, vector<64x10xf32>
    %cst_28 = arith.constant dense<0.000000e+00> : vector<8x10xf32>
    %82 = tpu.matmul %80, %81, %cst_28 {dimension_numbers = #tpu.dot_dimension_numbers<[1], [0], [0], [1], [0, 0, 1, 1], [], []>} : vector<8x64xf32>, vector<64x10xf32>, vector<8x10xf32> -> vector<8x10xf32>
    %c0_29 = arith.constant 0 : index
    %c0_30 = arith.constant 0 : index
    %83 = vector.load %arg8[%c0_29, %c0_30] : memref<1x10xf32, #tpu.memory_space<vmem>>, vector<1x10xf32>
    %84 = vector.broadcast %83 : vector<1x10xf32> to vector<8x10xf32>
    %85 = arith.addf %82, %84 : vector<8x10xf32>
    %cst_31 = arith.constant dense<0xFF800000> : vector<8xf32>
    %86 = vector.multi_reduction <maximumf>, %85, %cst_31 [1] : vector<8x10xf32> to vector<8xf32>
    %87 = vector.shape_cast %86 : vector<8xf32> to vector<8x1xf32>
    %88 = vector.broadcast %87 : vector<8x1xf32> to vector<8x10xf32>
    %89 = arith.subf %85, %88 : vector<8x10xf32>
    %90 = math.exp %89 : vector<8x10xf32>
    %cst_32 = arith.constant dense<0.000000e+00> : vector<8xf32>
    %91 = vector.multi_reduction <add>, %90, %cst_32 [1] : vector<8x10xf32> to vector<8xf32>
    %92 = vector.shape_cast %91 : vector<8xf32> to vector<8x1xf32>
    %93 = math.log %92 : vector<8x1xf32>
    %94 = vector.broadcast %93 : vector<8x1xf32> to vector<8x10xf32>
    %95 = arith.subf %89, %94 : vector<8x10xf32>
    %c0_33 = arith.constant 0 : index
    %c0_34 = arith.constant 0 : index
    %96 = vector.load %arg9[%c0_33, %c0_34] : memref<8x10xf32, #tpu.memory_space<vmem>>, vector<8x10xf32>
    tpu.vector_store %arg9[%c0_33, %c0_34], %95 {strides = array<i32>} : memref<8x10xf32, #tpu.memory_space<vmem>>, vector<8x10xf32>,
    return
  }
  func.func @transform_0(%arg0: i32, %arg1: memref<1xi32, #tpu.memory_space<smem>>) -> (i32, i32) {
    %c0_i32 = arith.constant 0 : i32
    %c0_i32_0 = arith.constant 0 : i32
    return %arg0, %c0_i32 : i32, i32
  }
  func.func @transform_1(%arg0: i32, %arg1: memref<1xi32, #tpu.memory_space<smem>>) -> (i32, i32) {
    %c0_i32 = arith.constant 0 : i32
    %c0_i32_0 = arith.constant 0 : i32
    %c0_i32_1 = arith.constant 0 : i32
    return %c0_i32, %c0_i32_0 : i32, i32
  }
  func.func @transform_2(%arg0: i32, %arg1: memref<1xi32, #tpu.memory_space<smem>>) -> (i32, i32) {
    %c0_i32 = arith.constant 0 : i32
    %c0_i32_0 = arith.constant 0 : i32
    %c0_i32_1 = arith.constant 0 : i32
    return %c0_i32, %c0_i32_0 : i32, i32
  }
  func.func @transform_3(%arg0: i32, %arg1: memref<1xi32, #tpu.memory_space<smem>>) -> (i32, i32) {
    %c0_i32 = arith.constant 0 : i32
    %c0_i32_0 = arith.constant 0 : i32
    %c0_i32_1 = arith.constant 0 : i32
    return %c0_i32, %c0_i32_0 : i32, i32
  }
  func.func @transform_4(%arg0: i32, %arg1: memref<1xi32, #tpu.memory_space<smem>>) -> (i32, i32) {
    %c0_i32 = arith.constant 0 : i32
    %c0_i32_0 = arith.constant 0 : i32
    %c0_i32_1 = arith.constant 0 : i32
    return %c0_i32, %c0_i32_0 : i32, i32
  }
  func.func @transform_5(%arg0: i32, %arg1: memref<1xi32, #tpu.memory_space<smem>>) -> (i32, i32) {
    %c0_i32 = arith.constant 0 : i32
    %c0_i32_0 = arith.constant 0 : i32
    %c0_i32_1 = arith.constant 0 : i32
    return %c0_i32, %c0_i32_0 : i32, i32
  }
  func.func @transform_6(%arg0: i32, %arg1: memref<1xi32, #tpu.memory_space<smem>>) -> (i32, i32) {
    %c0_i32 = arith.constant 0 : i32
    %c0_i32_0 = arith.constant 0 : i32
    %c0_i32_1 = arith.constant 0 : i32
    return %c0_i32, %c0_i32_0 : i32, i32
  }
  func.func @transform_7(%arg0: i32, %arg1: memref<1xi32, #tpu.memory_space<smem>>) -> (i32, i32) {
    %c0_i32 = arith.constant 0 : i32
    %c0_i32_0 = arith.constant 0 : i32
    return %arg0, %c0_i32 : i32, i32
  }
}

</mosaic_0001>

<llo_original>
// kernel: tpu_custom_call.1
$region0: #{tpu_custom_call.1}
  #allocation0 [shape = 'u32[]', space=smem, size = 0x4, offset = 0x4, fixed_abs, tag = 'smem constant byte address 0x4 - core index']
  #allocation1 [shape = 'u32[144,128]{1,0:T(1,128)}', space=vmem, size = 0x12000, scoped, tag = 'internal scratch']
  #allocation2 [shape = 's32[1]{0}', space=sflag, size = 0x4, scoped, tag = 'scoped memory for tpu_custom_call.1']
  #allocation3 [shape = 's32[1]{0:T(128)S(6)}', space=smem, size = 0x200, scoped, tag = 'prefetched SMEM operand 0']
  %s0 = inlined_call_operand.<no memory space> [shape: s32[1], index: 0, kind: input, shape index: {}]
  %s1 = inlined_call_operand.vmem [shape: f32[16,896], index: 1, kind: input, shape index: {}]
  %s2 = inlined_call_operand.hbm [shape: f32[896,128], index: 2, kind: input, shape index: {}]
  %s3 = inlined_call_operand.vmem [shape: f32[1,128], index: 3, kind: input, shape index: {}]
  %s4 = inlined_call_operand.vmem [shape: f32[128,64], index: 4, kind: input, shape index: {}]
  %s5 = inlined_call_operand.vmem [shape: f32[1,64], index: 5, kind: input, shape index: {}]
  %s6 = inlined_call_operand.vmem [shape: f32[64,10], index: 6, kind: input, shape index: {}]
  %s7 = inlined_call_operand.vmem [shape: f32[1,10], index: 7, kind: input, shape index: {}]
  %s8 = inlined_call_operand.hbm [shape: f32[16,10], index: 8, kind: output, shape index: {}]
  %s9 = sld [smem:[#allocation0]]
  $region65: #{tpu_custom_call.1} parent=0
    _
  %s11 = ssub.s32 1, %s9
  %s12 = scalar_select 0, %s11, %s9
  %13 = sst [smem:[#allocation3]] %s0
  $region1: #{tpu_custom_call.1} parent=0
    #allocation4 [shape = 'u8[458752]{0}', space=vmem, size = 0x70000, scoped, tag = 'input window, operand 2, single buffered']
    #allocation5 [shape = 's32[2]{0}', space=sflag, size = 0x8, scoped, tag = 'scoped memory for tpu_custom_call.1']
    #allocation6 [shape = 's32[2]{0}', space=sflag, size = 0x8, scoped, tag = 'scoped memory for tpu_custom_call.1']
    #allocation7 [shape = 'u8[8192]{0}', space=vmem, size = 0x2000, scoped, tag = 'output window, operand 0']
    %14 = vsyncpa [#allocation5], 0
    %15 = vsyncpa [#allocation6], 0
    %s16 = scalar_lea.sflag [#allocation6], 1
    %17 = vsyncpa %s16, 0
    loop: start=0, step=1, limit=4
    $region2: #{tpu_custom_call.1} parent=1 // loop_pre_header
      _
    $region3: #{tpu_custom_call.1} parent=1 // loop_header
      %s19 = sphi 0, %s23
      %p20 = scmp.ge.s32.totalorder %s19, 4
      %s29 = sphi 0, %s31
      %s32 = sphi 0, %s29
      %s33 = sphi 0, %s32
      %s49 = sphi 0, %s33
      %s53 = sphi 0, %s53
      %s55 = sphi 0, %s53
      %s56 = sphi 0, %s55
      %s70 = sphi 0, %s56
      %s74 = sphi 0, %s74
      %s76 = sphi 0, %s74
      %s77 = sphi 0, %s76
      %s91 = sphi 0, %s77
      %s95 = sphi 0, %s95
      %s97 = sphi 0, %s95
      %s98 = sphi 0, %s97
      %s112 = sphi 0, %s98
      %s116 = sphi 0, %s116
      %s118 = sphi 0, %s116
      %s119 = sphi 0, %s118
      %s133 = sphi 0, %s119
      %s137 = sphi 0, %s137
      %s139 = sphi 0, %s137
      %s140 = sphi 0, %s139
      %s154 = sphi 0, %s140
      %s158 = sphi 0, %s158
      %s160 = sphi 0, %s158
      %s161 = sphi 0, %s160
      %s175 = sphi 0, %s161
      %s181 = sphi 0, %s183
      %s184 = sphi 0, %s181
      %s185 = sphi 0, %s184
      %s201 = sphi 0, %s185
    $region4: #{tpu_custom_call.1} parent=1 // loop_header_branch
      %22 = sbr.rel (%p20) target = $region8
    $region5: #{tpu_custom_call.1} parent=1 // loop_body
      %s24 = ssub.s32 %s19, 1
      %s25 = ssub.s32 %s19, 2
      %s26 = sadd.s32 %s19, 1
      %s27 = ssub.s32 %s19, %s26
      %p28 = scmp.eq.s32.totalorder %s27, 0
      %s30 = sadd.s32 %s29, 1
      %s31 = scalar_select %p28, %s29, %s30
      %p34 = pneg %p28
      %p35 = scmp.eq.s32.totalorder %s19, 1
      %p36 = por %p34, %p35
      %p37 = scmp.ne.s32.totalorder %s29, %s32
      %p38 = scmp.eq.s32.totalorder %s19, 0
      %p39 = por %p37, %p38
      %p40 = scmp.ne.s32.totalorder %s29, %s32
      %p41 = scmp.eq.s32.totalorder %s24, 1
      %p42 = por %p40, %p41
      %p43 = scmp.ne.s32.totalorder %s32, %s33
      %p44 = scmp.eq.s32.totalorder %s24, 0
      %p45 = por %p43, %p44
      %p46 = scmp.ne.s32.totalorder %s32, %s33
      %p47 = scmp.eq.s32.totalorder %s25, 1
      %p48 = por %p46, %p47
      %p50 = scmp.ne.s32.totalorder %s33, %s49
      %p51 = scmp.eq.s32.totalorder %s25, 0
      %p52 = por %p50, %p51
      %s54 = sadd.s32 %s53, 1
      %p57 = scmp.eq.s32.totalorder %s19, 1
      %p58 = scmp.ne.s32.totalorder %s53, %s55
      %p59 = scmp.eq.s32.totalorder %s19, 0
      %p60 = por %p58, %p59
      %p61 = scmp.ne.s32.totalorder %s53, %s55
      %p62 = scmp.eq.s32.totalorder %s24, 1
      %p63 = por %p61, %p62
      %p64 = scmp.ne.s32.totalorder %s55, %s56
      %p65 = scmp.eq.s32.totalorder %s24, 0
      %p66 = por %p64, %p65
      %p67 = scmp.ne.s32.totalorder %s55, %s56
      %p68 = scmp.eq.s32.totalorder %s25, 1
      %p69 = por %p67, %p68
      %p71 = scmp.ne.s32.totalorder %s56, %s70
      %p72 = scmp.eq.s32.totalorder %s25, 0
      %p73 = por %p71, %p72
      %s75 = sadd.s32 %s74, 1
      %p78 = scmp.eq.s32.totalorder %s19, 1
      %p79 = scmp.ne.s32.totalorder %s74, %s76
      %p80 = scmp.eq.s32.totalorder %s19, 0
      %p81 = por %p79, %p80
      %p82 = scmp.ne.s32.totalorder %s74, %s76
      %p83 = scmp.eq.s32.totalorder %s24, 1
      %p84 = por %p82, %p83
      %p85 = scmp.ne.s32.totalorder %s76, %s77
      %p86 = scmp.eq.s32.totalorder %s24, 0
      %p87 = por %p85, %p86
      %p88 = scmp.ne.s32.totalorder %s76, %s77
      %p89 = scmp.eq.s32.totalorder %s25, 1
      %p90 = por %p88, %p89
      %p92 = scmp.ne.s32.totalorder %s77, %s91
      %p93 = scmp.eq.s32.totalorder %s25, 0
      %p94 = por %p92, %p93
      %s96 = sadd.s32 %s95, 1
      %p99 = scmp.eq.s32.totalorder %s19, 1
      %p100 = scmp.ne.s32.totalorder %s95, %s97
      %p101 = scmp.eq.s32.totalorder %s19, 0
      %p102 = por %p100, %p101
      %p103 = scmp.ne.s32.totalorder %s95, %s97
      %p104 = scmp.eq.s32.totalorder %s24, 1
      %p105 = por %p103, %p104
      %p106 = scmp.ne.s32.totalorder %s97, %s98
      %p107 = scmp.eq.s32.totalorder %s24, 0
      %p108 = por %p106, %p107
      %p109 = scmp.ne.s32.totalorder %s97, %s98
      %p110 = scmp.eq.s32.totalorder %s25, 1
      %p111 = por %p109, %p110
      %p113 = scmp.ne.s32.totalorder %s98, %s112
      %p114 = scmp.eq.s32.totalorder %s25, 0
      %p115 = por %p113, %p114
      %s117 = sadd.s32 %s116, 1
      %p120 = scmp.eq.s32.totalorder %s19, 1
      %p121 = scmp.ne.s32.totalorder %s116, %s118
      %p122 = scmp.eq.s32.totalorder %s19, 0
      %p123 = por %p121, %p122
      %p124 = scmp.ne.s32.totalorder %s116, %s118
      %p125 = scmp.eq.s32.totalorder %s24, 1
      %p126 = por %p124, %p125
      %p127 = scmp.ne.s32.totalorder %s118, %s119
      %p128 = scmp.eq.s32.totalorder %s24, 0
      %p129 = por %p127, %p128
      %p130 = scmp.ne.s32.totalorder %s118, %s119
      %p131 = scmp.eq.s32.totalorder %s25, 1
      %p132 = por %p130, %p131
      %p134 = scmp.ne.s32.totalorder %s119, %s133
      %p135 = scmp.eq.s32.totalorder %s25, 0
      %p136 = por %p134, %p135
      %s138 = sadd.s32 %s137, 1
      %p141 = scmp.eq.s32.totalorder %s19, 1
      %p142 = scmp.ne.s32.totalorder %s137, %s139
      %p143 = scmp.eq.s32.totalorder %s19, 0
      %p144 = por %p142, %p143
      %p145 = scmp.ne.s32.totalorder %s137, %s139
      %p146 = scmp.eq.s32.totalorder %s24, 1
      %p147 = por %p145, %p146
      %p148 = scmp.ne.s32.totalorder %s139, %s140
      %p149 = scmp.eq.s32.totalorder %s24, 0
      %p150 = por %p148, %p149
      %p151 = scmp.ne.s32.totalorder %s139, %s140
      %p152 = scmp.eq.s32.totalorder %s25, 1
      %p153 = por %p151, %p152
      %p155 = scmp.ne.s32.totalorder %s140, %s154
      %p156 = scmp.eq.s32.totalorder %s25, 0
      %p157 = por %p155, %p156
      %s159 = sadd.s32 %s158, 1
      %p162 = scmp.eq.s32.totalorder %s19, 1
      %p163 = scmp.ne.s32.totalorder %s158, %s160
      %p164 = scmp.eq.s32.totalorder %s19, 0
      %p165 = por %p163, %p164
      %p166 = scmp.ne.s32.totalorder %s158, %s160
      %p167 = scmp.eq.s32.totalorder %s24, 1
      %p168 = por %p166, %p167
      %p169 = scmp.ne.s32.totalorder %s160, %s161
      %p170 = scmp.eq.s32.totalorder %s24, 0
      %p171 = por %p169, %p170
      %p172 = scmp.ne.s32.totalorder %s160, %s161
      %p173 = scmp.eq.s32.totalorder %s25, 1
      %p174 = por %p172, %p173
      %p176 = scmp.ne.s32.totalorder %s161, %s175
      %p177 = scmp.eq.s32.totalorder %s25, 0
      %p178 = por %p176, %p177
      %s179 = ssub.s32 %s19, %s26
      %p180 = scmp.eq.s32.totalorder %s179, 0
      %s182 = sadd.s32 %s181, 1
      %s183 = scalar_select %p180, %s181, %s182
      %p186 = pneg %p180
      %p187 = scmp.eq.s32.totalorder %s19, 1
      %p188 = por %p186, %p187
      %p189 = scmp.ne.s32.totalorder %s181, %s184
      %p190 = scmp.eq.s32.totalorder %s19, 0
      %p191 = por %p189, %p190
      %p192 = scmp.ne.s32.totalorder %s181, %s184
      %p193 = scmp.eq.s32.totalorder %s24, 1
      %p194 = por %p192, %p193
      %p195 = scmp.ne.s32.totalorder %s184, %s185
      %p196 = scmp.eq.s32.totalorder %s24, 0
      %p197 = por %p195, %p196
      %p198 = scmp.ne.s32.totalorder %s184, %s185
      %p199 = scmp.eq.s32.totalorder %s25, 1
      %p200 = por %p198, %p199
      %p202 = scmp.ne.s32.totalorder %s185, %s201
      %p203 = scmp.eq.s32.totalorder %s25, 0
      %p204 = por %p202, %p203
      %p205 = scmp.le.s32.totalorder 1, %s19
      %p206 = scmp.lt.s32.totalorder %s19, 3
      %p207 = pnand %p205, %p206
      %p208 = pneg %p207
      // Predicated region
      $region9: #{tpu_custom_call.1} parent=5 // pred_check
        _
      $region10: #{tpu_custom_call.1} parent=5 // pred_check_branch
        %210 = sbr.rel (%p207) target = $region12
      $region11: #{tpu_custom_call.1} parent=5 // pred_region
        %s211 = ssub.s32 %s19, 1
        // Predicated region
        $region13: #{tpu_custom_call.1} parent=11 // pred_check
          %p212 = pneg %p66
        $region14: #{tpu_custom_call.1} parent=11 // pred_check_branch
          %214 = sbr.rel (%p212) target = $region16
        $region15: #{tpu_custom_call.1} parent=11 // pred_region
          %s216 = ssub.s32 14336, 14336
          %217 = vsyncadd [#allocation5], %s216
          %s218 = sshll.u32 [#allocation4], 4
          %s219 = int_to_ptr.vmem [resolvable:$true] %s218
          %224 = dma.hbm_to_vmem [thread:$0]  %s2, 14336, %s219, [#allocation5], 128, 128, 8
        $region16: #{tpu_custom_call.1} parent=11 // pred_fallthru
          _
        // Predicated region
        $region17: #{tpu_custom_call.1} parent=11 // pred_check
          %p225 = pneg %p87
        $region18: #{tpu_custom_call.1} parent=11 // pred_check_branch
          %227 = sbr.rel (%p225) target = $region20
        $region19: #{tpu_custom_call.1} parent=11 // pred_region
          _
        $region20: #{tpu_custom_call.1} parent=11 // pred_fallthru
          _
        // Predicated region
        $region21: #{tpu_custom_call.1} parent=11 // pred_check
          %p228 = pneg %p108
        $region22: #{tpu_custom_call.1} parent=11 // pred_check_branch
          %230 = sbr.rel (%p228) target = $region24
        $region23: #{tpu_custom_call.1} parent=11 // pred_region
          _
        $region24: #{tpu_custom_call.1} parent=11 // pred_fallthru
          _
        // Predicated region
        $region25: #{tpu_custom_call.1} parent=11 // pred_check
          %p231 = pneg %p129
        $region26: #{tpu_custom_call.1} parent=11 // pred_check_branch
          %233 = sbr.rel (%p231) target = $region28
        $region27: #{tpu_custom_call.1} parent=11 // pred_region
          _
        $region28: #{tpu_custom_call.1} parent=11 // pred_fallthru
          _
        // Predicated region
        $region29: #{tpu_custom_call.1} parent=11 // pred_check
          %p234 = pneg %p150
        $region30: #{tpu_custom_call.1} parent=11 // pred_check_branch
          %236 = sbr.rel (%p234) target = $region32
        $region31: #{tpu_custom_call.1} parent=11 // pred_region
          _
        $region32: #{tpu_custom_call.1} parent=11 // pred_fallthru
          _
        // Predicated region
        $region33: #{tpu_custom_call.1} parent=11 // pred_check
          %p237 = pneg %p171
        $region34: #{tpu_custom_call.1} parent=11 // pred_check_branch
          %239 = sbr.rel (%p237) target = $region36
        $region35: #{tpu_custom_call.1} parent=11 // pred_region
          _
        $region36: #{tpu_custom_call.1} parent=11 // pred_fallthru
          _
      $region12: #{tpu_custom_call.1} parent=5 // pred_fallthru
        _
      %p240 = scmp.lt.s32.totalorder %s19, 2
      // Predicated region
      $region37: #{tpu_custom_call.1} parent=5 // pred_check
        %p241 = pneg %p240
      $region38: #{tpu_custom_call.1} parent=5 // pred_check_branch
        %243 = sbr.rel (%p241) target = $region40
      $region39: #{tpu_custom_call.1} parent=5 // pred_region
        // Predicated region
        $region41: #{tpu_custom_call.1} parent=39 // pred_check
          %p244 = pneg %p39
        $region42: #{tpu_custom_call.1} parent=39 // pred_check_branch
          %246 = sbr.rel (%p244) target = $region44
        $region43: #{tpu_custom_call.1} parent=39 // pred_region
          %p247 = scmp.lt.s32.totalorder %s19, 1
          %s248 = scalar_select %p247, %s19, 1
          %s249 = smul.addr %s248, 7
          %s250 = smul.addr %s249, 8
          %s251 = scalar_lea.vmem %s1, %s250
        $region44: #{tpu_custom_call.1} parent=39 // pred_fallthru
          _
      $region40: #{tpu_custom_call.1} parent=5 // pred_fallthru
        _
      %p252 = scmp.le.s32.totalorder 1, %s19
      %p253 = scmp.lt.s32.totalorder %s19, 3
      %p254 = pnand %p252, %p253
      %p255 = pneg %p254
      // Predicated region
      $region45: #{tpu_custom_call.1} parent=5 // pred_check
        _
      $region46: #{tpu_custom_call.1} parent=5 // pred_check_branch
        %257 = sbr.rel (%p254) target = $region48
      $region47: #{tpu_custom_call.1} parent=5 // pred_region
        %s258 = ssub.s32 %s19, 1
        // Predicated region
        $region49: #{tpu_custom_call.1} parent=47 // pred_check
          %p259 = pneg %p66
        $region50: #{tpu_custom_call.1} parent=47 // pred_check_branch
          %261 = sbr.rel (%p259) target = $region52
        $region51: #{tpu_custom_call.1} parent=47 // pred_region
          %262 = dma.done [#allocation5], 14336
        $region52: #{tpu_custom_call.1} parent=47 // pred_fallthru
          _
        %p263 = scmp.lt.s32.totalorder %s24, 1
        %s264 = scalar_select %p263, %s24, 1
        %s265 = smul.addr %s264, 7
        %s266 = smul.addr %s265, 8
        %s267 = scalar_lea.vmem %s1, %s266
        %p268 = pneg %p45
        %p269 = pneg %p42
        %p270 = pneg %p66
        %p271 = pneg %p63
        %p272 = pneg %p87
        %p273 = pneg %p84
        %p274 = pneg %p108
        %p275 = pneg %p105
        %p276 = pneg %p129
        %p277 = pneg %p126
        %p278 = pneg %p150
        %p279 = pneg %p147
        %p280 = pneg %p171
        %p281 = pneg %p168
        %p282 = pneg %p197
        %p283 = pneg %p194
        %s284 = sand.u32 %s184, 1
        %s285 = scalar_lea.sflag [#allocation6], %s284
        %s286 = sand.u32 %s184, 1
        %s287 = smul.addr %s286, 8
        %s288 = scalar_lea.vmem [#allocation7], %s287
        %p289 = scmp.lt.s32.totalorder %s24, 1
        %s290 = scalar_select %p289, %s24, 1
        %s291 = smul.addr %s290, 7
        %s292 = smul.addr %s291, 8
        %s293 = scalar_lea.vmem %s1, %s292
        %s294 = sld [smem:[#allocation3]]
        %s295 = smul.u32 %s24, 8
        %v296 = vld [vmem:[%s293] sm:$0xff]
        %v297 = vld [vmem:[%s293 + $0x8] sm:$0xff]
        %v298 = vld [vmem:[%s293 + $0x10] sm:$0xff]
        %v299 = vld [vmem:[%s293 + $0x18] sm:$0xff]
        %v300 = vld [vmem:[%s293 + $0x20] sm:$0xff]
        %v301 = vld [vmem:[%s293 + $0x28] sm:$0xff]
        %v302 = vld [vmem:[%s293 + $0x30] sm:$0xff]
        %v303 = vld [vmem:[#allocation4] sm:$0xff]
        %v304 = vld [vmem:[#allocation4 + $0x8] sm:$0xff]
        %v305 = vld [vmem:[#allocation4 + $0x10] sm:$0xff]
        %v306 = vld [vmem:[#allocation4 + $0x18] sm:$0xff]
        %v307 = vld [vmem:[#allocation4 + $0x20] sm:$0xff]
        %v308 = vld [vmem:[#allocation4 + $0x28] sm:$0xff]
        %v309 = vld [vmem:[#allocation4 + $0x30] sm:$0xff]
        %v310 = vld [vmem:[#allocation4 + $0x38] sm:$0xff]
        %v311 = vld [vmem:[#allocation4 + $0x40] sm:$0xff]
        %v312 = vld [vmem:[#allocation4 + $0x48] sm:$0xff]
        %v313 = vld [vmem:[#allocation4 + $0x50] sm:$0xff]
        %v314 = vld [vmem:[#allocation4 + $0x58] sm:$0xff]
        %v315 = vld [vmem:[#allocation4 + $0x60] sm:$0xff]
        %v316 = vld [vmem:[#allocation4 + $0x68] sm:$0xff]
        %v317 = vld [vmem:[#allocation4 + $0x70] sm:$0xff]
        %v318 = vld [vmem:[#allocation4 + $0x78] sm:$0xff]
        %v319 = vld [vmem:[#allocation4 + $0x80] sm:$0xff]
        %v320 = vld [vmem:[#allocation4 + $0x88] sm:$0xff]
        %v321 = vld [vmem:[#allocation4 + $0x90] sm:$0xff]
        %v322 = vld [vmem:[#allocation4 + $0x98] sm:$0xff]
        %v323 = vld [vmem:[#allocation4 + $0xa0] sm:$0xff]
        %v324 = vld [vmem:[#allocation4 + $0xa8] sm:$0xff]
        %v325 = vld [vmem:[#allocation4 + $0xb0] sm:$0xff]
        %v326 = vld [vmem:[#allocation4 + $0xb8] sm:$0xff]
        %v327 = vld [vmem:[#allocation4 + $0xc0] sm:$0xff]
        %v328 = vld [vmem:[#allocation4 + $0xc8] sm:$0xff]
        %v329 = vld [vmem:[#allocation4 + $0xd0] sm:$0xff]
        %v330 = vld [vmem:[#allocation4 + $0xd8] sm:$0xff]
        %v331 = vld [vmem:[#allocation4 + $0xe0] sm:$0xff]
        %v332 = vld [vmem:[#allocation4 + $0xe8] sm:$0xff]
        %v333 = vld [vmem:[#allocation4 + $0xf0] sm:$0xff]
        %v334 = vld [vmem:[#allocation4 + $0xf8] sm:$0xff]
        %v335 = vld [vmem:[#allocation4 + $0x100] sm:$0xff]
        %v336 = vld [vmem:[#allocation4 + $0x108] sm:$0xff]
        %v337 = vld [vmem:[#allocation4 + $0x110] sm:$0xff]
        %v338 = vld [vmem:[#allocation4 + $0x118] sm:$0xff]
        %v339 = vld [vmem:[#allocation4 + $0x120] sm:$0xff]
        %v340 = vld [vmem:[#allocation4 + $0x128] sm:$0xff]
        %v341 = vld [vmem:[#allocation4 + $0x130] sm:$0xff]
        %v342 = vld [vmem:[#allocation4 + $0x138] sm:$0xff]
        %v343 = vld [vmem:[#allocation4 + $0x140] sm:$0xff]
        %v344 = vld [vmem:[#allocation4 + $0x148] sm:$0xff]
        %v345 = vld [vmem:[#allocation4 + $0x150] sm:$0xff]
        %v346 = vld [vmem:[#allocation4 + $0x158] sm:$0xff]
        %v347 = vld [vmem:[#allocation4 + $0x160] sm:$0xff]
        %v348 = vld [vmem:[#allocation4 + $0x168] sm:$0xff]
        %v349 = vld [vmem:[#allocation4 + $0x170] sm:$0xff]
        %v350 = vld [vmem:[#allocation4 + $0x178] sm:$0xff]
        %v351 = vld [vmem:[#allocation4 + $0x180] sm:$0xff]
        %v352 = vld [vmem:[#allocation4 + $0x188] sm:$0xff]
        %v353 = vld [vmem:[#allocation4 + $0x190] sm:$0xff]
        %v354 = vld [vmem:[#allocation4 + $0x198] sm:$0xff]
        %v355 = vld [vmem:[#allocation4 + $0x1a0] sm:$0xff]
        %v356 = vld [vmem:[#allocation4 + $0x1a8] sm:$0xff]
        %v357 = vld [vmem:[#allocation4 + $0x1b0] sm:$0xff]
        %v358 = vld [vmem:[#allocation4 + $0x1b8] sm:$0xff]
        %v359 = vld [vmem:[#allocation4 + $0x1c0] sm:$0xff]
        %v360 = vld [vmem:[#allocation4 + $0x1c8] sm:$0xff]
        %v361 = vld [vmem:[#allocation4 + $0x1d0] sm:$0xff]
        %v362 = vld [vmem:[#allocation4 + $0x1d8] sm:$0xff]
        %v363 = vld [vmem:[#allocation4 + $0x1e0] sm:$0xff]
        %v364 = vld [vmem:[#allocation4 + $0x1e8] sm:$0xff]
        %v365 = vld [vmem:[#allocation4 + $0x1f0] sm:$0xff]
        %v366 = vld [vmem:[#allocation4 + $0x1f8] sm:$0xff]
        %v367 = vld [vmem:[#allocation4 + $0x200] sm:$0xff]
        %v368 = vld [vmem:[#allocation4 + $0x208] sm:$0xff]
        %v369 = vld [vmem:[#allocation4 + $0x210] sm:$0xff]
        %v370 = vld [vmem:[#allocation4 + $0x218] sm:$0xff]
        %v371 = vld [vmem:[#allocation4 + $0x220] sm:$0xff]
        %v372 = vld [vmem:[#allocation4 + $0x228] sm:$0xff]
        %v373 = vld [vmem:[#allocation4 + $0x230] sm:$0xff]
        %v374 = vld [vmem:[#allocation4 + $0x238] sm:$0xff]
        %v375 = vld [vmem:[#allocation4 + $0x240] sm:$0xff]
        %v376 = vld [vmem:[#allocation4 + $0x248] sm:$0xff]
        %v377 = vld [vmem:[#allocation4 + $0x250] sm:$0xff]
        %v378 = vld [vmem:[#allocation4 + $0x258] sm:$0xff]
        %v379 = vld [vmem:[#allocation4 + $0x260] sm:$0xff]
        %v380 = vld [vmem:[#allocation4 + $0x268] sm:$0xff]
        %v381 = vld [vmem:[#allocation4 + $0x270] sm:$0xff]
        %v382 = vld [vmem:[#allocation4 + $0x278] sm:$0xff]
        %v383 = vld [vmem:[#allocation4 + $0x280] sm:$0xff]
        %v384 = vld [vmem:[#allocation4 + $0x288] sm:$0xff]
        %v385 = vld [vmem:[#allocation4 + $0x290] sm:$0xff]
        %v386 = vld [vmem:[#allocation4 + $0x298] sm:$0xff]
        %v387 = vld [vmem:[#allocation4 + $0x2a0] sm:$0xff]
        %v388 = vld [vmem:[#allocation4 + $0x2a8] sm:$0xff]
        %v389 = vld [vmem:[#allocation4 + $0x2b0] sm:$0xff]
        %v390 = vld [vmem:[#allocation4 + $0x2b8] sm:$0xff]
        %v391 = vld [vmem:[#allocation4 + $0x2c0] sm:$0xff]
        %v392 = vld [vmem:[#allocation4 + $0x2c8] sm:$0xff]
        %v393 = vld [vmem:[#allocation4 + $0x2d0] sm:$0xff]
        %v394 = vld [vmem:[#allocation4 + $0x2d8] sm:$0xff]
        %v395 = vld [vmem:[#allocation4 + $0x2e0] sm:$0xff]
        %v396 = vld [vmem:[#allocation4 + $0x2e8] sm:$0xff]
        %v397 = vld [vmem:[#allocation4 + $0x2f0] sm:$0xff]
        %v398 = vld [vmem:[#allocation4 + $0x2f8] sm:$0xff]
        %v399 = vld [vmem:[#allocation4 + $0x300] sm:$0xff]
        %v400 = vld [vmem:[#allocation4 + $0x308] sm:$0xff]
        %v401 = vld [vmem:[#allocation4 + $0x310] sm:$0xff]
        %v402 = vld [vmem:[#allocation4 + $0x318] sm:$0xff]
        %v403 = vld [vmem:[#allocation4 + $0x320] sm:$0xff]
        %v404 = vld [vmem:[#allocation4 + $0x328] sm:$0xff]
        %v405 = vld [vmem:[#allocation4 + $0x330] sm:$0xff]
        %v406 = vld [vmem:[#allocation4 + $0x338] sm:$0xff]
        %v407 = vld [vmem:[#allocation4 + $0x340] sm:$0xff]
        %v408 = vld [vmem:[#allocation4 + $0x348] sm:$0xff]
        %v409 = vld [vmem:[#allocation4 + $0x350] sm:$0xff]
        %v410 = vld [vmem:[#allocation4 + $0x358] sm:$0xff]
        %v411 = vld [vmem:[#allocation4 + $0x360] sm:$0xff]
        %v412 = vld [vmem:[#allocation4 + $0x368] sm:$0xff]
        %v413 = vld [vmem:[#allocation4 + $0x370] sm:$0xff]
        %v414 = vld [vmem:[#allocation4 + $0x378] sm:$0xff]
        %v415 = vld [vmem:[%s3] sm:$0x1]
        %v417 = vlaneseq
        %v418 = vshrl.u32 %v417, 7
        %v419 = vsub.s32 0, %v418
        %v420 = vrot.slane %v415, %v419
        %422 = vmatprep.subr.mxu0 0.0
        %423 = vmatpush1.msra.mxu0 %v303
        %424 = vmatprep.subr.mxu0 0.0
        %425 = vmatpush1.msra.mxu0 %v304
        %426 = vmatprep.subr.mxu0 0.0
        %427 = vmatpush1.msra.mxu0 %v305
        %428 = vmatprep.subr.mxu0 0.0
        %429 = vmatpush1.msra.mxu0 %v306
        %430 = vmatprep.subr.mxu0 0.0
        %431 = vmatpush1.msra.mxu0 %v307
        %432 = vmatprep.subr.mxu0 0.0
        %433 = vmatpush1.msra.mxu0 %v308
        %434 = vmatprep.subr.mxu0 0.0
        %435 = vmatpush1.msra.mxu0 %v309
        %436 = vmatprep.subr.mxu0 0.0
        %437 = vmatpush1.msra.mxu0 %v310
        %438 = vmatprep.subr.mxu0 0.0
        %439 = vmatpush1.msra.mxu0 %v311
        %440 = vmatprep.subr.mxu0 0.0
        %441 = vmatpush1.msra.mxu0 %v312
        %442 = vmatprep.subr.mxu0 0.0
        %443 = vmatpush1.msra.mxu0 %v313
        %444 = vmatprep.subr.mxu0 0.0
        %445 = vmatpush1.msra.mxu0 %v314
        %446 = vmatprep.subr.mxu0 0.0
        %447 = vmatpush1.msra.mxu0 %v315
        %448 = vmatprep.subr.mxu0 0.0
        %449 = vmatpush1.msra.mxu0 %v316
        %450 = vmatprep.subr.mxu0 0.0
        %451 = vmatpush1.msra.mxu0 %v317
        %452 = vmatprep.subr.mxu0 0.0
        %453 = vmatpush1.msra.mxu0 %v318
        %454 = vmatprep.subr.mxu0 0.0
        %455 = vmatpush1.msra.mxu0 %v319
        %456 = vmatprep.subr.mxu0 0.0
        %457 = vmatpush1.msra.mxu0 %v320
        %458 = vmatprep.subr.mxu0 0.0
        %459 = vmatpush1.msra.mxu0 %v321
        %460 = vmatprep.subr.mxu0 0.0
        %461 = vmatpush1.msra.mxu0 %v322
        %462 = vmatprep.subr.mxu0 0.0
        %463 = vmatpush1.msra.mxu0 %v323
        %464 = vmatprep.subr.mxu0 0.0
        %465 = vmatpush1.msra.mxu0 %v324
        %466 = vmatprep.subr.mxu0 0.0
        %467 = vmatpush1.msra.mxu0 %v325
        %468 = vmatprep.subr.mxu0 0.0
        %469 = vmatpush1.msra.mxu0 %v326
        %470 = vmatprep.subr.mxu0 0.0
        %471 = vmatpush1.msra.mxu0 %v327
        %472 = vmatprep.subr.mxu0 0.0
        %473 = vmatpush1.msra.mxu0 %v328
        %474 = vmatprep.subr.mxu0 0.0
        %475 = vmatpush1.msra.mxu0 %v329
        %476 = vmatprep.subr.mxu0 0.0
        %477 = vmatpush1.msra.mxu0 %v330
        %478 = vmatprep.subr.mxu0 0.0
        %479 = vmatpush1.msra.mxu0 %v331
        %480 = vmatprep.subr.mxu0 0.0
        %481 = vmatpush1.msra.mxu0 %v332
        %482 = vmatprep.subr.mxu0 0.0
        %483 = vmatpush1.msra.mxu0 %v333
        %484 = vmatprep.subr.mxu0 0.0
        %485 = vmatpush1.msra.mxu0 %v334
        %486 = vmatprep.mubr.f32.mxu0 %v297
        %487 = vmatmul.mubr.f32.gmra.mrb[0].mxu0 %v296
        %v488 = vpop.f32.mrb[0].mxu0
        %v489 = vadd.f32 %v420, %v488
        %v490 = vpop.f32.mrb[0].mxu0
        %491 = vdwg.mxu0
        %492 = vmatprep.subr.mxu0 0.0
        %493 = vmatpush1.msra.mxu0 %v335
        %494 = vmatprep.subr.mxu0 0.0
        %495 = vmatpush1.msra.mxu0 %v336
        %496 = vmatprep.subr.mxu0 0.0
        %497 = vmatpush1.msra.mxu0 %v337
        %498 = vmatprep.subr.mxu0 0.0
        %499 = vmatpush1.msra.mxu0 %v338
        %500 = vmatprep.subr.mxu0 0.0
        %501 = vmatpush1.msra.mxu0 %v339
        %502 = vmatprep.subr.mxu0 0.0
        %503 = vmatpush1.msra.mxu0 %v340
        %504 = vmatprep.subr.mxu0 0.0
        %505 = vmatpush1.msra.mxu0 %v341
        %506 = vmatprep.subr.mxu0 0.0
        %507 = vmatpush1.msra.mxu0 %v342
        %508 = vmatprep.subr.mxu0 0.0
        %509 = vmatpush1.msra.mxu0 %v343
        %510 = vmatprep.subr.mxu0 0.0
        %511 = vmatpush1.msra.mxu0 %v344
        %512 = vmatprep.subr.mxu0 0.0
        %513 = vmatpush1.msra.mxu0 %v345
        %514 = vmatprep.subr.mxu0 0.0
        %515 = vmatpush1.msra.mxu0 %v346
        %516 = vmatprep.subr.mxu0 0.0
        %517 = vmatpush1.msra.mxu0 %v347
        %518 = vmatprep.subr.mxu0 0.0
        %519 = vmatpush1.msra.mxu0 %v348
        %520 = vmatprep.subr.mxu0 0.0
        %521 = vmatpush1.msra.mxu0 %v349
        %522 = vmatprep.subr.mxu0 0.0
        %523 = vmatpush1.msra.mxu0 %v350
        %524 = vmatprep.subr.mxu0 0.0
        %525 = vmatpush1.msra.mxu0 %v351
        %526 = vmatprep.subr.mxu0 0.0
        %527 = vmatpush1.msra.mxu0 %v352
        %528 = vmatprep.subr.mxu0 0.0
        %529 = vmatpush1.msra.mxu0 %v353
        %530 = vmatprep.subr.mxu0 0.0
        %531 = vmatpush1.msra.mxu0 %v354
        %532 = vmatprep.subr.mxu0 0.0
        %533 = vmatpush1.msra.mxu0 %v355
        %534 = vmatprep.subr.mxu0 0.0
        %535 = vmatpush1.msra.mxu0 %v356
        %536 = vmatprep.subr.mxu0 0.0
        %537 = vmatpush1.msra.mxu0 %v357
        %538 = vmatprep.subr.mxu0 0.0
        %539 = vmatpush1.msra.mxu0 %v358
        %540 = vmatprep.subr.mxu0 0.0
        %541 = vmatpush1.msra.mxu0 %v359
        %542 = vmatprep.subr.mxu0 0.0
        %543 = vmatpush1.msra.mxu0 %v360
        %544 = vmatprep.subr.mxu0 0.0
        %545 = vmatpush1.msra.mxu0 %v361
        %546 = vmatprep.subr.mxu0 0.0
        %547 = vmatpush1.msra.mxu0 %v362
        %548 = vmatprep.subr.mxu0 0.0
        %549 = vmatpush1.msra.mxu0 %v363
        %550 = vmatprep.subr.mxu0 0.0
        %551 = vmatpush1.msra.mxu0 %v364
        %552 = vmatprep.subr.mxu0 0.0
        %553 = vmatpush1.msra.mxu0 %v365
        %554 = vmatprep.subr.mxu0 0.0
        %555 = vmatpush1.msra.mxu0 %v366
        %556 = vmatprep.mubr.f32.mxu0 %v299
        %557 = vmatmul.mubr.f32.gmra.mrb[0].mxu0 %v298
        %v558 = vpop.f32.mrb[0].mxu0
        %v559 = vadd.f32 %v489, %v558
        %v560 = vpop.f32.mrb[0].mxu0
        %561 = vdwg.mxu0
        %562 = vmatprep.subr.mxu0 0.0
        %563 = vmatpush1.msra.mxu0 %v367
        %564 = vmatprep.subr.mxu0 0.0
        %565 = vmatpush1.msra.mxu0 %v368
        %566 = vmatprep.subr.mxu0 0.0
        %567 = vmatpush1.msra.mxu0 %v369
        %568 = vmatprep.subr.mxu0 0.0
        %569 = vmatpush1.msra.mxu0 %v370
        %570 = vmatprep.subr.mxu0 0.0
        %571 = vmatpush1.msra.mxu0 %v371
        %572 = vmatprep.subr.mxu0 0.0
        %573 = vmatpush1.msra.mxu0 %v372
        %574 = vmatprep.subr.mxu0 0.0
        %575 = vmatpush1.msra.mxu0 %v373
        %576 = vmatprep.subr.mxu0 0.0
        %577 = vmatpush1.msra.mxu0 %v374
        %578 = vmatprep.subr.mxu0 0.0
        %579 = vmatpush1.msra.mxu0 %v375
        %580 = vmatprep.subr.mxu0 0.0
        %581 = vmatpush1.msra.mxu0 %v376
        %582 = vmatprep.subr.mxu0 0.0
        %583 = vmatpush1.msra.mxu0 %v377
        %584 = vmatprep.subr.mxu0 0.0
        %585 = vmatpush1.msra.mxu0 %v378
        %586 = vmatprep.subr.mxu0 0.0
        %587 = vmatpush1.msra.mxu0 %v379
        %588 = vmatprep.subr.mxu0 0.0
        %589 = vmatpush1.msra.mxu0 %v380
        %590 = vmatprep.subr.mxu0 0.0
        %591 = vmatpush1.msra.mxu0 %v381
        %592 = vmatprep.subr.mxu0 0.0
        %593 = vmatpush1.msra.mxu0 %v382
        %594 = vmatprep.subr.mxu0 0.0
        %595 = vmatpush1.msra.mxu0 %v383
        %596 = vmatprep.subr.mxu0 0.0
        %597 = vmatpush1.msra.mxu0 %v384
        %598 = vmatprep.subr.mxu0 0.0
        %599 = vmatpush1.msra.mxu0 %v385
        %600 = vmatprep.subr.mxu0 0.0
        %601 = vmatpush1.msra.mxu0 %v386
        %602 = vmatprep.subr.mxu0 0.0
        %603 = vmatpush1.msra.mxu0 %v387
        %604 = vmatprep.subr.mxu0 0.0
        %605 = vmatpush1.msra.mxu0 %v388
        %606 = vmatprep.subr.mxu0 0.0
        %607 = vmatpush1.msra.mxu0 %v389
        %608 = vmatprep.subr.mxu0 0.0
        %609 = vmatpush1.msra.mxu0 %v390
        %610 = vmatprep.subr.mxu0 0.0
        %611 = vmatpush1.msra.mxu0 %v391
        %612 = vmatprep.subr.mxu0 0.0
        %613 = vmatpush1.msra.mxu0 %v392
        %614 = vmatprep.subr.mxu0 0.0
        %615 = vmatpush1.msra.mxu0 %v393
        %616 = vmatprep.subr.mxu0 0.0
        %617 = vmatpush1.msra.mxu0 %v394
        %618 = vmatprep.subr.mxu0 0.0
        %619 = vmatpush1.msra.mxu0 %v395
        %620 = vmatprep.subr.mxu0 0.0
        %621 = vmatpush1.msra.mxu0 %v396
        %622 = vmatprep.subr.mxu0 0.0
        %623 = vmatpush1.msra.mxu0 %v397
        %624 = vmatprep.subr.mxu0 0.0
        %625 = vmatpush1.msra.mxu0 %v398
        %626 = vmatprep.mubr.f32.mxu0 %v301
        %627 = vmatmul.mubr.f32.gmra.mrb[0].mxu0 %v300
        %v628 = vpop.f32.mrb[0].mxu0
        %v629 = vadd.f32 %v559, %v628
        %v630 = vpop.f32.mrb[0].mxu0
        %631 = vdwg.mxu0
        %632 = vmatprep.subr.mxu0 0.0
        %633 = vmatpush1.msra.mxu0 %v399
        %634 = vmatprep.subr.mxu0 0.0
        %635 = vmatpush1.msra.mxu0 %v400
        %636 = vmatprep.subr.mxu0 0.0
        %637 = vmatpush1.msra.mxu0 %v401
        %638 = vmatprep.subr.mxu0 0.0
        %639 = vmatpush1.msra.mxu0 %v402
        %640 = vmatprep.subr.mxu0 0.0
        %641 = vmatpush1.msra.mxu0 %v403
        %642 = vmatprep.subr.mxu0 0.0
        %643 = vmatpush1.msra.mxu0 %v404
        %644 = vmatprep.subr.mxu0 0.0
        %645 = vmatpush1.msra.mxu0 %v405
        %646 = vmatprep.subr.mxu0 0.0
        %647 = vmatpush1.msra.mxu0 %v406
        %648 = vmatprep.subr.mxu0 0.0
        %649 = vmatpush1.msra.mxu0 %v407
        %650 = vmatprep.subr.mxu0 0.0
        %651 = vmatpush1.msra.mxu0 %v408
        %652 = vmatprep.subr.mxu0 0.0
        %653 = vmatpush1.msra.mxu0 %v409
        %654 = vmatprep.subr.mxu0 0.0
        %655 = vmatpush1.msra.mxu0 %v410
        %656 = vmatprep.subr.mxu0 0.0
        %657 = vmatpush1.msra.mxu0 %v411
        %658 = vmatprep.subr.mxu0 0.0
        %659 = vmatpush1.msra.mxu0 %v412
        %660 = vmatprep.subr.mxu0 0.0
        %661 = vmatpush1.msra.mxu0 %v413
        %662 = vmatprep.subr.mxu0 0.0
        %663 = vmatpush1.msra.mxu0 %v414
        %664 = vmatprep.subr.mxu0 0.0
        %665 = vmatpush1.msra.mxu0 0.0
        %666 = vmatprep.subr.mxu0 0.0
        %667 = vmatpush1.msra.mxu0 0.0
        %668 = vmatprep.subr.mxu0 0.0
        %669 = vmatpush1.msra.mxu0 0.0
        %670 = vmatprep.subr.mxu0 0.0
        %671 = vmatpush1.msra.mxu0 0.0
        %672 = vmatprep.subr.mxu0 0.0
        %673 = vmatpush1.msra.mxu0 0.0
        %674 = vmatprep.subr.mxu0 0.0
        %675 = vmatpush1.msra.mxu0 0.0
        %676 = vmatprep.subr.mxu0 0.0
        %677 = vmatpush1.msra.mxu0 0.0
        %678 = vmatprep.subr.mxu0 0.0
        %679 = vmatpush1.msra.mxu0 0.0
        %680 = vmatprep.subr.mxu0 0.0
        %681 = vmatpush1.msra.mxu0 0.0
        %682 = vmatprep.subr.mxu0 0.0
        %683 = vmatpush1.msra.mxu0 0.0
        %684 = vmatprep.subr.mxu0 0.0
        %685 = vmatpush1.msra.mxu0 0.0
        %686 = vmatprep.subr.mxu0 0.0
        %687 = vmatpush1.msra.mxu0 0.0
        %688 = vmatprep.subr.mxu0 0.0
        %689 = vmatpush1.msra.mxu0 0.0
        %690 = vmatprep.subr.mxu0 0.0
        %691 = vmatpush1.msra.mxu0 0.0
        %692 = vmatprep.subr.mxu0 0.0
        %693 = vmatpush1.msra.mxu0 0.0
        %694 = vmatprep.subr.mxu0 0.0
        %695 = vmatpush1.msra.mxu0 0.0
        %696 = vmatprep.mubr.f32.mxu0 0.0
        %697 = vmatmul.mubr.f32.gmra.mrb[0].mxu0 %v302
        %v698 = vpop.f32.mrb[0].mxu0
        %v699 = vadd.f32 %v629, %v698
        %v700 = vpop.f32.mrb[0].mxu0
        %701 = vdwg.mxu0
        %v702 = vmax.f32 %v699, 0.0
        %v703 = vlaneseq
        %v704 = vshrl.u32 %v703, 7
        %v705 = vstv %s295
        %v706 = vadd.s32 %v704, %v705
        %v707 = vlaneseq
        %v708 = vand.u32 %v707, 127
        %v709 = vmul.u32 %v706, 2654435769
        %v710 = vmul.u32 %v708, 2246822507
        %v711 = vxor.u32 %v709, %v710
        %v712 = vstv %s294
        %v713 = vxor.u32 %v711, %v712
        %v714 = vxor.u32 %v713, 305441741
        %v715 = vshrl.u32 %v714, 16
        %v716 = vxor.u32 %v714, %v715
        %v717 = vmul.u32 %v716, 2146121005
        %v718 = vshrl.u32 %v717, 15
        %v719 = vxor.u32 %v717, %v718
        %v720 = vmul.u32 %v719, 2221713035
        %v721 = vshrl.u32 %v720, 16
        %v722 = vxor.u32 %v720, %v721
        %vm723 = vcmp.ge.u32.totalorder %v722, 858993459
        %v724 = vmul.f32 %v702, 1.25
        %v725 = vsel %vm723, %v724, 0.0
        %v726 = vld [vmem:[%s4] sm:$0xff]
        %v727 = vld [vmem:[%s4 + $0x8] sm:$0xff]
        %v728 = vld [vmem:[%s4 + $0x10] sm:$0xff]
        %v729 = vld [vmem:[%s4 + $0x18] sm:$0xff]
        %v730 = vld [vmem:[%s4 + $0x20] sm:$0xff]
        %v731 = vld [vmem:[%s4 + $0x28] sm:$0xff]
        %v732 = vld [vmem:[%s4 + $0x30] sm:$0xff]
        %v733 = vld [vmem:[%s4 + $0x38] sm:$0xff]
        %v734 = vld [vmem:[%s4 + $0x40] sm:$0xff]
        %v735 = vld [vmem:[%s4 + $0x48] sm:$0xff]
        %v736 = vld [vmem:[%s4 + $0x50] sm:$0xff]
        %v737 = vld [vmem:[%s4 + $0x58] sm:$0xff]
        %v738 = vld [vmem:[%s4 + $0x60] sm:$0xff]
        %v739 = vld [vmem:[%s4 + $0x68] sm:$0xff]
        %v740 = vld [vmem:[%s4 + $0x70] sm:$0xff]
        %v741 = vld [vmem:[%s4 + $0x78] sm:$0xff]
        %v742 = vld [vmem:[%s5] sm:$0x1]
        %v744 = vlaneseq
        %v745 = vshrl.u32 %v744, 7
        %v746 = vsub.s32 0, %v745
        %v747 = vrot.slane %v742, %v746
        %749 = vmatprep.subr.mxu0 0.0
        %750 = vmatpush1.msra.mxu0 %v726
        %751 = vmatprep.subr.mxu0 0.0
        %752 = vmatpush1.msra.mxu0 %v727
        %753 = vmatprep.subr.mxu0 0.0
        %754 = vmatpush1.msra.mxu0 %v728
        %755 = vmatprep.subr.mxu0 0.0
        %756 = vmatpush1.msra.mxu0 %v729
        %757 = vmatprep.subr.mxu0 0.0
        %758 = vmatpush1.msra.mxu0 %v730
        %759 = vmatprep.subr.mxu0 0.0
        %760 = vmatpush1.msra.mxu0 %v731
        %761 = vmatprep.subr.mxu0 0.0
        %762 = vmatpush1.msra.mxu0 %v732
        %763 = vmatprep.subr.mxu0 0.0
        %764 = vmatpush1.msra.mxu0 %v733
        %765 = vmatprep.subr.mxu0 0.0
        %766 = vmatpush1.msra.mxu0 %v734
        %767 = vmatprep.subr.mxu0 0.0
        %768 = vmatpush1.msra.mxu0 %v735
        %769 = vmatprep.subr.mxu0 0.0
        %770 = vmatpush1.msra.mxu0 %v736
        %771 = vmatprep.subr.mxu0 0.0
        %772 = vmatpush1.msra.mxu0 %v737
        %773 = vmatprep.subr.mxu0 0.0
        %774 = vmatpush1.msra.mxu0 %v738
        %775 = vmatprep.subr.mxu0 0.0
        %776 = vmatpush1.msra.mxu0 %v739
        %777 = vmatprep.subr.mxu0 0.0
        %778 = vmatpush1.msra.mxu0 %v740
        %779 = vmatprep.subr.mxu0 0.0
        %780 = vmatpush1.msra.mxu0 %v741
        %781 = vmatprep.subr.mxu0 0.0
        %782 = vmatpush1.msra.mxu0 0.0
        %783 = vmatprep.subr.mxu0 0.0
        %784 = vmatpush1.msra.mxu0 0.0
        %785 = vmatprep.subr.mxu0 0.0
        %786 = vmatpush1.msra.mxu0 0.0
        %787 = vmatprep.subr.mxu0 0.0
        %788 = vmatpush1.msra.mxu0 0.0
        %789 = vmatprep.subr.mxu0 0.0
        %790 = vmatpush1.msra.mxu0 0.0
        %791 = vmatprep.subr.mxu0 0.0
        %792 = vmatpush1.msra.mxu0 0.0
        %793 = vmatprep.subr.mxu0 0.0
        %794 = vmatpush1.msra.mxu0 0.0
        %795 = vmatprep.subr.mxu0 0.0
        %796 = vmatpush1.msra.mxu0 0.0
        %797 = vmatprep.subr.mxu0 0.0
        %798 = vmatpush1.msra.mxu0 0.0
        %799 = vmatprep.subr.mxu0 0.0
        %800 = vmatpush1.msra.mxu0 0.0
        %801 = vmatprep.subr.mxu0 0.0
        %802 = vmatpush1.msra.mxu0 0.0
        %803 = vmatprep.subr.mxu0 0.0
        %804 = vmatpush1.msra.mxu0 0.0
        %805 = vmatprep.subr.mxu0 0.0
        %806 = vmatpush1.msra.mxu0 0.0
        %807 = vmatprep.subr.mxu0 0.0
        %808 = vmatpush1.msra.mxu0 0.0
        %809 = vmatprep.subr.mxu0 0.0
        %810 = vmatpush1.msra.mxu0 0.0
        %811 = vmatprep.subr.mxu0 0.0
        %812 = vmatpush1.msra.mxu0 0.0
        %813 = vmatprep.mubr.f32.mxu0 0.0
        %814 = vmatmul.mubr.f32.gmra.mrb[0].mxu0 %v725
        %v815 = vpop.f32.mrb[0].mxu0
        %v816 = vadd.f32 %v747, %v815
        %v817 = vpop.f32.mrb[0].mxu0
        %818 = vdwg.mxu0
        %v819 = vmax.f32 %v816, 0.0
        %v820 = vxor.u32 %v713, 1450766081
        %v821 = vshrl.u32 %v820, 16
        %v822 = vxor.u32 %v820, %v821
        %v823 = vmul.u32 %v822, 2146121005
        %v824 = vshrl.u32 %v823, 15
        %v825 = vxor.u32 %v823, %v824
        %v826 = vmul.u32 %v825, 2221713035
        %v827 = vshrl.u32 %v826, 16
        %v828 = vxor.u32 %v826, %v827
        %vm829 = vcmp.ge.u32.totalorder %v828, 858993459
        %v830 = vmul.f32 %v819, 1.25
        %v831 = vsel %vm829, %v830, 0.0
        %v832 = vld [vmem:[%s6] sm:$0xff]
        %v833 = vld [vmem:[%s6 + $0x8] sm:$0xff]
        %v834 = vld [vmem:[%s6 + $0x10] sm:$0xff]
        %v835 = vld [vmem:[%s6 + $0x18] sm:$0xff]
        %v836 = vld [vmem:[%s6 + $0x20] sm:$0xff]
        %v837 = vld [vmem:[%s6 + $0x28] sm:$0xff]
        %v838 = vld [vmem:[%s6 + $0x30] sm:$0xff]
        %v839 = vld [vmem:[%s6 + $0x38] sm:$0xff]
        %v840 = vld [vmem:[%s7] sm:$0x1]
        %v842 = vlaneseq
        %v843 = vshrl.u32 %v842, 7
        %v844 = vsub.s32 0, %v843
        %v845 = vrot.slane %v840, %v844
        %vm847 = vcmask 523264
        %v849 = vsel %vm847, %v831, 0
        %851 = vmatprep.subr.mxu0 0.0
        %852 = vmatpush1.msra.mxu0 %v832
        %853 = vmatprep.subr.mxu0 0.0
        %854 = vmatpush1.msra.mxu0 %v833
        %855 = vmatprep.subr.mxu0 0.0
        %856 = vmatpush1.msra.mxu0 %v834
        %857 = vmatprep.subr.mxu0 0.0
        %858 = vmatpush1.msra.mxu0 %v835
        %859 = vmatprep.subr.mxu0 0.0
        %860 = vmatpush1.msra.mxu0 %v836
        %861 = vmatprep.subr.mxu0 0.0
        %862 = vmatpush1.msra.mxu0 %v837
        %863 = vmatprep.subr.mxu0 0.0
        %864 = vmatpush1.msra.mxu0 %v838
        %865 = vmatprep.subr.mxu0 0.0
        %866 = vmatpush1.msra.mxu0 %v839
        %867 = vmatprep.subr.mxu0 0.0
        %868 = vmatpush1.msra.mxu0 0.0
        %869 = vmatprep.subr.mxu0 0.0
        %870 = vmatpush1.msra.mxu0 0.0
        %871 = vmatprep.subr.mxu0 0.0
        %872 = vmatpush1.msra.mxu0 0.0
        %873 = vmatprep.subr.mxu0 0.0
        %874 = vmatpush1.msra.mxu0 0.0
        %875 = vmatprep.subr.mxu0 0.0
        %876 = vmatpush1.msra.mxu0 0.0
        %877 = vmatprep.subr.mxu0 0.0
        %878 = vmatpush1.msra.mxu0 0.0
        %879 = vmatprep.subr.mxu0 0.0
        %880 = vmatpush1.msra.mxu0 0.0
        %881 = vmatprep.subr.mxu0 0.0
        %882 = vmatpush1.msra.mxu0 0.0
        %883 = vmatprep.subr.mxu0 0.0
        %884 = vmatpush1.msra.mxu0 0.0
        %885 = vmatprep.subr.mxu0 0.0
        %886 = vmatpush1.msra.mxu0 0.0
        %887 = vmatprep.subr.mxu0 0.0
        %888 = vmatpush1.msra.mxu0 0.0
        %889 = vmatprep.subr.mxu0 0.0
        %890 = vmatpush1.msra.mxu0 0.0
        %891 = vmatprep.subr.mxu0 0.0
        %892 = vmatpush1.msra.mxu0 0.0
        %893 = vmatprep.subr.mxu0 0.0
        %894 = vmatpush1.msra.mxu0 0.0
        %895 = vmatprep.subr.mxu0 0.0
        %896 = vmatpush1.msra.mxu0 0.0
        %897 = vmatprep.subr.mxu0 0.0
        %898 = vmatpush1.msra.mxu0 0.0
        %899 = vmatprep.subr.mxu0 0.0
        %900 = vmatpush1.msra.mxu0 0.0
        %901 = vmatprep.subr.mxu0 0.0
        %902 = vmatpush1.msra.mxu0 0.0
        %903 = vmatprep.subr.mxu0 0.0
        %904 = vmatpush1.msra.mxu0 0.0
        %905 = vmatprep.subr.mxu0 0.0
        %906 = vmatpush1.msra.mxu0 0.0
        %907 = vmatprep.subr.mxu0 0.0
        %908 = vmatpush1.msra.mxu0 0.0
        %909 = vmatprep.subr.mxu0 0.0
        %910 = vmatpush1.msra.mxu0 0.0
        %911 = vmatprep.subr.mxu0 0.0
        %912 = vmatpush1.msra.mxu0 0.0
        %913 = vmatprep.subr.mxu0 0.0
        %914 = vmatpush1.msra.mxu0 0.0
        %915 = vmatprep.mubr.f32.mxu0 0.0
        %916 = vmatmul.mubr.f32.gmra.mrb[0].mxu0 %v849
        %v917 = vpop.f32.mrb[0].mxu0
        %v918 = vadd.f32 %v845, %v917
        %v919 = vpop.f32.mrb[0].mxu0
        %920 = vdwg.mxu0
        %vm921 = vcmask 80896
        %v922 = vsel %vm921, %v918, -inf
        %923 = vmax.xlane.f32.xlu0 %v922
        %v924 = vpop.xlane.xlu0 %923
        %v925 = vsub.f32 %v918, %v924
        %v926 = vmul.f32 %v925, 1.442695
        %v927 = vpow.pop %v926
        %v928 = vsel %vm921, %v927, 0.0
        %929 = vadd.xlane.f32.xlu0 %v928
        %v930 = vpop.xlane.xlu0 %929
        %v931 = vlog2.pop %v930
        %v932 = vmul.f32 %v931, 0.6931472
        %v933 = vsub.f32 %v925, %v932
        %934 = vst.msk [vmem:[%s288] sm:$0xff] %vm921, %v933
        %s935 = sand.u32 %s184, 1
        %s936 = scalar_lea.sflag [#allocation6], %s935
        %s937 = sand.u32 %s184, 1
        %s938 = smul.addr %s937, 8
        %s939 = scalar_lea.vmem [#allocation7], %s938
        // Predicated region
        $region53: #{tpu_custom_call.1} parent=47 // pred_check
          %p940 = pneg %p194
        $region54: #{tpu_custom_call.1} parent=47 // pred_check_branch
          %942 = sbr.rel (%p940) target = $region56
        $region55: #{tpu_custom_call.1} parent=47 // pred_region
          %s944 = ssub.s32 128, 128
          %945 = vsyncadd %s936, %s944
          %s946 = smul.addr %s24, 128
          %s947 = scalar_lea.hbm %s8, %s946
          %s949 = sshll.u32 %s939, 4
          %s950 = int_to_ptr.vmem [resolvable:$true] %s949
          %952 = dma.vmem_to_hbm [thread:$0]  %s950, 128, %s947, %s936
        $region56: #{tpu_custom_call.1} parent=47 // pred_fallthru
          _
      $region48: #{tpu_custom_call.1} parent=5 // pred_fallthru
        _
      %p953 = scmp.le.s32.totalorder 2, %s19
      // Predicated region
      $region57: #{tpu_custom_call.1} parent=5 // pred_check
        %p954 = pneg %p953
      $region58: #{tpu_custom_call.1} parent=5 // pred_check_branch
        %956 = sbr.rel (%p954) target = $region60
      $region59: #{tpu_custom_call.1} parent=5 // pred_region
        %s957 = ssub.s32 %s19, 2
        // Predicated region
        $region61: #{tpu_custom_call.1} parent=59 // pred_check
          %p958 = pneg %p200
        $region62: #{tpu_custom_call.1} parent=59 // pred_check_branch
          %960 = sbr.rel (%p958) target = $region64
        $region63: #{tpu_custom_call.1} parent=59 // pred_region
          %s961 = sand.u32 %s185, 1
          %s962 = scalar_lea.sflag [#allocation6], %s961
          %s963 = sand.u32 %s185, 1
          %s964 = smul.addr %s963, 8
          %s965 = scalar_lea.vmem [#allocation7], %s964
          %966 = dma.done %s962, 128
        $region64: #{tpu_custom_call.1} parent=59 // pred_fallthru
          _
      $region60: #{tpu_custom_call.1} parent=5 // pred_fallthru
        _
    $region6: #{tpu_custom_call.1} parent=1 // loop_footer
      %s23 = sadd.s32 1, %s19
    $region7: #{tpu_custom_call.1} parent=1 // loop_footer_branch
      %18 = sbr.rel target = $region3
    $region8: #{tpu_custom_call.1} parent=1 // loop_exit
      _
    %967 = vsyncpa [#allocation5], 1
    %s968 = scalar_lea.sflag [#allocation5], 1
    %969 = vsyncpa %s968, 1
    %970 = vsyncpa [#allocation6], 1
    %s971 = scalar_lea.sflag [#allocation6], 1
    %972 = vsyncpa %s971, 1

</llo_original>
